<compile_context>
chip_gen: v7x
topology: tpu7x:2x2x1
jax: 0.10.0
libtpu: 0.0.40
codegen_flags: <defaults>
</compile_context>

<pallas_src>
import jax
import jax.numpy as jnp
from jax.experimental import pallas as pl
from jax.experimental.pallas import tpu as pltpu


HIDDEN = 256          # matches nn.Linear(input_size, 256) / Linear(256, 256)


def _round_up(x, m):
    return ((x + m - 1) // m) * m


def _pick_tile_m(M):
    """Big tiles amortize per-step overhead; >=2 steps lets v7x megacore split M."""
    if M <= 16:
        return _round_up(M, 8)
    return min(1024, _round_up(pl.cdiv(M, 2), 8))


# --------------------------------------------------------------------------
# Fused MLP kernel: one tile of rows, all three layers
# --------------------------------------------------------------------------
def _mlp_kernel(x_ref, w1_ref, b1_ref, w2_ref, b2_ref, w3_ref, b3_ref,
                alpha_ref, o_ref):
    """o = (prelu(prelu(x@W1+b1)@W2+b2))@W3+b3 for one (tile_m, K) row tile.

    x arrives f32 and is cast to bf16 in-kernel (VPU work hidden under MXU);
    W* are bf16; accumulation + bias + PReLU in f32; alphas are SMEM scalars.
    """
    a1 = alpha_ref[0]
    a2 = alpha_ref[1]

    x = x_ref[...].astype(jnp.bfloat16)
    h = jnp.dot(x, w1_ref[...], preferred_element_type=jnp.float32)
    h = h + b1_ref[...]
    h = jnp.where(h >= 0.0, h, a1 * h)                              # PReLU 1

    g = jnp.dot(h.astype(jnp.bfloat16), w2_ref[...],
                preferred_element_type=jnp.float32)
    g = g + b2_ref[...]
    g = jnp.where(g >= 0.0, g, a2 * g)                              # PReLU 2

    o = jnp.dot(g.astype(jnp.bfloat16), w3_ref[...],
                preferred_element_type=jnp.float32)
    o = o + b3_ref[...]
    o_ref[...] = o.astype(o_ref.dtype)


# --------------------------------------------------------------------------
# Forward wrapper
# --------------------------------------------------------------------------
def encoder_end2end_forward(x, params):
    """x: (batch, input_size) float32 -> (batch, output_size) float32."""
    M, K = x.shape
    w1, b1 = params["w1"], params["b1"]
    w2, b2 = params["w2"], params["b2"]
    w3, b3 = params["w3"], params["b3"]
    alphas = params["alphas"]
    N = params["output_size"]

    assert w1.shape == (K, HIDDEN), (w1.shape, K)

    # Only pre-kernel transform: pad the batch axis (rows) so the grid divides
    # evenly. No K padding, no pre-cast of x — both were extra HBM passes.
    tile_m = _pick_tile_m(M)
    Mp = _round_up(M, tile_m)
    if Mp > M:
        x = jnp.pad(x, ((0, Mp - M), (0, 0)))

    grid = (Mp // tile_m,)
    full = lambda i: (0, 0)   # weights/biases stay VMEM-resident across steps

    flops = 2 * Mp * (K * HIDDEN + HIDDEN * HIDDEN + HIDDEN * N)
    bytes_accessed = (Mp * K * 4                       # x (f32)
                      + w1.size * 2 + w2.size * 2 + w3.size * 2   # bf16 weights
                      + (b1.size + b2.size + b3.size) * 4
                      + Mp * N * 4)                    # output (f32, true width)

    out = pl.pallas_call(
        _mlp_kernel,
        out_shape=jax.ShapeDtypeStruct((Mp, N), jnp.float32),
        grid=grid,
        in_specs=[
            pl.BlockSpec((tile_m, K), lambda i: (i, 0)),       # x rows (f32)
            pl.BlockSpec((K, HIDDEN), full),                   # W1 bf16
            pl.BlockSpec((1, HIDDEN), full),                   # b1
            pl.BlockSpec((HIDDEN, HIDDEN), full),              # W2 bf16
            pl.BlockSpec((1, HIDDEN), full),                   # b2
            pl.BlockSpec((HIDDEN, N), full),                   # W3 bf16 (true N)
            pl.BlockSpec((1, N), full),                        # b3 (true N)
            pl.BlockSpec(memory_space=pltpu.MemorySpace.SMEM), # PReLU alphas
        ],
        out_specs=pl.BlockSpec((tile_m, N), lambda i: (i, 0)), # true-width writeback
        compiler_params=pltpu.CompilerParams(
            dimension_semantics=("parallel",),                 # v7x: 2 TCs split M
            vmem_limit_bytes=32 * 1024 * 1024),                # safe on v5e default
        cost_estimate=pl.CostEstimate(
            flops=flops, transcendentals=0, bytes_accessed=bytes_accessed),
    )(x, w1, b1, w2, b2, w3, b3, alphas)

    # Padded rows pick up bias+PReLU (nonzero) — never consume `out` directly.
    return out[:M] if Mp > M else out


# --------------------------------------------------------------------------
# Parameter init (PyTorch Linear layout (out, in); pre-transposed here)
# --------------------------------------------------------------------------
def init_params(key, input_size, output_size):
    ks = jax.random.split(key, 6)

    def linear(kw, kb, fan_in, fan_out):
        bound = 1.0 / (fan_in ** 0.5)
        w = jax.random.uniform(kw, (fan_out, fan_in), jnp.float32, -bound, bound)
        b = jax.random.uniform(kb, (fan_out,), jnp.float32, -bound, bound)
        return w, b

    w1, b1 = linear(ks[0], ks[1], input_size, HIDDEN)
    w2, b2 = linear(ks[2], ks[3], HIDDEN, HIDDEN)
    w3, b3 = linear(ks[4], ks[5], HIDDEN, output_size)

    return {
        # pre-transposed to (in, out), bf16 for MXU-native rate; no padding
        "w1": w1.T.astype(jnp.bfloat16),
        "b1": b1.reshape(1, HIDDEN),
        "w2": w2.T.astype(jnp.bfloat16),
        "b2": b2.reshape(1, HIDDEN),
        "w3": w3.T.astype(jnp.bfloat16),
        "b3": b3.reshape(1, output_size),
        "alphas": jnp.array([0.25, 0.25], jnp.float32),  # nn.PReLU() init
        "output_size": output_size,
        # unpadded f32 copies only for the correctness checks below
        "_ref": {"w1": w1, "b1": b1, "w2": w2, "b2": b2, "w3": w3, "b3": b3},
    }


def _prelu(v, a):
    return jnp.where(v >= 0.0, v, a * v)


def reference_forward_bf16(x, ref, alphas):
    """Pure-JAX reference matching the kernel's bf16-matmul / f32-acc numerics."""
    h = jnp.dot(x.astype(jnp.bfloat16), ref["w1"].T.astype(jnp.bfloat16),
                preferred_element_type=jnp.float32) + ref["b1"]
    h = _prelu(h, alphas[0])
    g = jnp.dot(h.astype(jnp.bfloat16), ref["w2"].T.astype(jnp.bfloat16),
                preferred_element_type=jnp.float32) + ref["b2"]
    g = _prelu(g, alphas[1])
    o = jnp.dot(g.astype(jnp.bfloat16), ref["w3"].T.astype(jnp.bfloat16),
                preferred_element_type=jnp.float32) + ref["b3"]
    return o


def reference_forward_f32(x, ref, alphas):
    """Pure fp32 reference mirroring the PyTorch module exactly."""
    h = _prelu(x @ ref["w1"].T + ref["b1"], alphas[0])
    g = _prelu(h @ ref["w2"].T + ref["b2"], alphas[1])
    return g @ ref["w3"].T + ref["b3"]


if __name__ == "__main__":
    key = jax.random.PRNGKey(0)
    k_x, k_p = jax.random.split(key)

    input_size = 32
    output_size = 10
    batch = 2

    params = init_params(k_p, input_size, output_size)
    x = jax.random.uniform(k_x, (batch, input_size), dtype=jnp.float32)

    out = encoder_end2end_forward(x, params)
    out = jax.block_until_ready(out)
    assert out.shape == (batch, output_size), out.shape

    ref_bf16 = reference_forward_bf16(x, params["_ref"], params["alphas"])
    diff_bf16 = float(jnp.max(jnp.abs(out - ref_bf16)))
    assert diff_bf16 < 2e-2, f"max diff vs bf16-matched reference: {diff_bf16}"

    # Drift vs the pure fp32 PyTorch model comes only from bf16 matmul inputs.
    ref_f32 = reference_forward_f32(x, params["_ref"], params["alphas"])
    diff_f32 = float(jnp.max(jnp.abs(out - ref_f32)))
    assert diff_f32 < 1e-1, f"max diff vs fp32 reference: {diff_f32}"

    print("KERNEL_OK")
</pallas_src>

<mosaic_0001>
module attributes {stable_mosaic.version = 11 : i64} {
  func.func @_mlp_kernel(%arg0: i32, %arg1: memref<8x32xf32, #tpu.memory_space<vmem>>, %arg2: memref<32x256xbf16, #tpu.memory_space<vmem>>, %arg3: memref<1x256xf32, #tpu.memory_space<vmem>>, %arg4: memref<256x256xbf16, #tpu.memory_space<vmem>>, %arg5: memref<1x256xf32, #tpu.memory_space<vmem>>, %arg6: memref<256x10xbf16, #tpu.memory_space<vmem>>, %arg7: memref<1x10xf32, #tpu.memory_space<vmem>>, %arg8: memref<2xf32, #tpu.memory_space<smem>>, %arg9: memref<8x10xf32, #tpu.memory_space<vmem>>) attributes {dimension_semantics = [#tpu.dimension_semantics<parallel>], iteration_bounds = array<i64: 1>, scalar_prefetch = 0 : i64, scratch_operands = 0 : i64, tpu.core_type = #tpu.core_type<tc>, window_params = [{transform_indices = @transform_0, window_bounds = array<i64: 8, 32>}, {pipeline_mode = #tpu.pipeline_mode<synchronous>, transform_indices = @transform_1, window_bounds = array<i64: 32, 256>}, {pipeline_mode = #tpu.pipeline_mode<synchronous>, transform_indices = @transform_2, window_bounds = array<i64: 1, 256>}, {pipeline_mode = #tpu.pipeline_mode<synchronous>, transform_indices = @transform_3, window_bounds = array<i64: 256, 256>}, {pipeline_mode = #tpu.pipeline_mode<synchronous>, transform_indices = @transform_4, window_bounds = array<i64: 1, 256>}, {pipeline_mode = #tpu.pipeline_mode<synchronous>, transform_indices = @transform_5, window_bounds = array<i64: 256, 10>}, {pipeline_mode = #tpu.pipeline_mode<synchronous>, transform_indices = @transform_6, window_bounds = array<i64: 1, 10>}, {transform_indices = @transform_7, window_bounds = array<i64: 2>}, {transform_indices = @transform_8, window_bounds = array<i64: 8, 10>}]} {
    %c0 = arith.constant 0 : index
    %0 = memref.load %arg8[%c0] : memref<2xf32, #tpu.memory_space<smem>>
    %c1 = arith.constant 1 : index
    %1 = memref.load %arg8[%c1] : memref<2xf32, #tpu.memory_space<smem>>
    %c0_0 = arith.constant 0 : index
    %c0_1 = arith.constant 0 : index
    %2 = vector.load %arg1[%c0_0, %c0_1] : memref<8x32xf32, #tpu.memory_space<vmem>>, vector<8x32xf32>
    %3 = arith.truncf %2 : vector<8x32xf32> to vector<8x32xbf16>
    %c0_2 = arith.constant 0 : index
    %c0_3 = arith.constant 0 : index
    %4 = vector.load %arg2[%c0_2, %c0_3] : memref<32x256xbf16, #tpu.memory_space<vmem>>, vector<32x256xbf16>
    %cst = arith.constant dense<0.000000e+00> : vector<8x256xf32>
    %5 = tpu.matmul %3, %4, %cst {dimension_numbers = #tpu.dot_dimension_numbers<[1], [0], [0], [1], [0, 0, 1, 1], [], []>} : vector<8x32xbf16>, vector<32x256xbf16>, vector<8x256xf32> -> vector<8x256xf32>
    %c0_4 = arith.constant 0 : index
    %c0_5 = arith.constant 0 : index
    %6 = vector.load %arg3[%c0_4, %c0_5] : memref<1x256xf32, #tpu.memory_space<vmem>>, vector<1x256xf32>
    %7 = vector.broadcast %6 : vector<1x256xf32> to vector<8x256xf32>
    %8 = arith.addf %5, %7 : vector<8x256xf32>
    %cst_6 = arith.constant 0.000000e+00 : f32
    %9 = vector.broadcast %cst_6 : f32 to vector<8x256xf32>
    %10 = arith.cmpf oge, %8, %9 : vector<8x256xf32>
    %11 = vector.broadcast %0 : f32 to vector<8x256xf32>
    %12 = arith.mulf %11, %8 : vector<8x256xf32>
    %13 = arith.select %10, %8, %12 : vector<8x256xi1>, vector<8x256xf32>
    %14 = arith.truncf %13 : vector<8x256xf32> to vector<8x256xbf16>
    %c0_7 = arith.constant 0 : index
    %c0_8 = arith.constant 0 : index
    %15 = vector.load %arg4[%c0_7, %c0_8] : memref<256x256xbf16, #tpu.memory_space<vmem>>, vector<256x256xbf16>
    %cst_9 = arith.constant dense<0.000000e+00> : vector<8x256xf32>
    %16 = tpu.matmul %14, %15, %cst_9 {dimension_numbers = #tpu.dot_dimension_numbers<[1], [0], [0], [1], [0, 0, 1, 1], [], []>} : vector<8x256xbf16>, vector<256x256xbf16>, vector<8x256xf32> -> vector<8x256xf32>
    %c0_10 = arith.constant 0 : index
    %c0_11 = arith.constant 0 : index
    %17 = vector.load %arg5[%c0_10, %c0_11] : memref<1x256xf32, #tpu.memory_space<vmem>>, vector<1x256xf32>
    %18 = vector.broadcast %17 : vector<1x256xf32> to vector<8x256xf32>
    %19 = arith.addf %16, %18 : vector<8x256xf32>
    %cst_12 = arith.constant 0.000000e+00 : f32
    %20 = vector.broadcast %cst_12 : f32 to vector<8x256xf32>
    %21 = arith.cmpf oge, %19, %20 : vector<8x256xf32>
    %22 = vector.broadcast %1 : f32 to vector<8x256xf32>
    %23 = arith.mulf %22, %19 : vector<8x256xf32>
    %24 = arith.select %21, %19, %23 : vector<8x256xi1>, vector<8x256xf32>
    %25 = arith.truncf %24 : vector<8x256xf32> to vector<8x256xbf16>
    %c0_13 = arith.constant 0 : index
    %c0_14 = arith.constant 0 : index
    %26 = vector.load %arg6[%c0_13, %c0_14] : memref<256x10xbf16, #tpu.memory_space<vmem>>, vector<256x10xbf16>
    %cst_15 = arith.constant dense<0.000000e+00> : vector<8x10xf32>
    %27 = tpu.matmul %25, %26, %cst_15 {dimension_numbers = #tpu.dot_dimension_numbers<[1], [0], [0], [1], [0, 0, 1, 1], [], []>} : vector<8x256xbf16>, vector<256x10xbf16>, vector<8x10xf32> -> vector<8x10xf32>
    %c0_16 = arith.constant 0 : index
    %c0_17 = arith.constant 0 : index
    %28 = vector.load %arg7[%c0_16, %c0_17] : memref<1x10xf32, #tpu.memory_space<vmem>>, vector<1x10xf32>
    %29 = vector.broadcast %28 : vector<1x10xf32> to vector<8x10xf32>
    %30 = arith.addf %27, %29 : vector<8x10xf32>
    %c0_18 = arith.constant 0 : index
    %c0_19 = arith.constant 0 : index
    %31 = vector.load %arg9[%c0_18, %c0_19] : memref<8x10xf32, #tpu.memory_space<vmem>>, vector<8x10xf32>
    tpu.vector_store %arg9[%c0_18, %c0_19], %30 {strides = array<i32>} : memref<8x10xf32, #tpu.memory_space<vmem>>, vector<8x10xf32>,
    return
  }
  func.func @transform_0(%arg0: i32) -> (i32, i32) {
    %c0_i32 = arith.constant 0 : i32
    %c0_i32_0 = arith.constant 0 : i32
    return %arg0, %c0_i32 : i32, i32
  }
  func.func @transform_1(%arg0: i32) -> (i32, i32) {
    %c0_i32 = arith.constant 0 : i32
    %c0_i32_0 = arith.constant 0 : i32
    %c0_i32_1 = arith.constant 0 : i32
    return %c0_i32, %c0_i32_0 : i32, i32
  }
  func.func @transform_2(%arg0: i32) -> (i32, i32) {
    %c0_i32 = arith.constant 0 : i32
    %c0_i32_0 = arith.constant 0 : i32
    %c0_i32_1 = arith.constant 0 : i32
    return %c0_i32, %c0_i32_0 : i32, i32
  }
  func.func @transform_3(%arg0: i32) -> (i32, i32) {
    %c0_i32 = arith.constant 0 : i32
    %c0_i32_0 = arith.constant 0 : i32
    %c0_i32_1 = arith.constant 0 : i32
    return %c0_i32, %c0_i32_0 : i32, i32
  }
  func.func @transform_4(%arg0: i32) -> (i32, i32) {
    %c0_i32 = arith.constant 0 : i32
    %c0_i32_0 = arith.constant 0 : i32
    %c0_i32_1 = arith.constant 0 : i32
    return %c0_i32, %c0_i32_0 : i32, i32
  }
  func.func @transform_5(%arg0: i32) -> (i32, i32) {
    %c0_i32 = arith.constant 0 : i32
    %c0_i32_0 = arith.constant 0 : i32
    %c0_i32_1 = arith.constant 0 : i32
    return %c0_i32, %c0_i32_0 : i32, i32
  }
  func.func @transform_6(%arg0: i32) -> (i32, i32) {
    %c0_i32 = arith.constant 0 : i32
    %c0_i32_0 = arith.constant 0 : i32
    %c0_i32_1 = arith.constant 0 : i32
    return %c0_i32, %c0_i32_0 : i32, i32
  }
  func.func @transform_7(%arg0: i32) -> i32 {
    %c0_i32 = arith.constant 0 : i32
    %c0_i32_0 = arith.constant 0 : i32
    return %c0_i32 : i32
  }
  func.func @transform_8(%arg0: i32) -> (i32, i32) {
    %c0_i32 = arith.constant 0 : i32
    %c0_i32_0 = arith.constant 0 : i32
    return %arg0, %c0_i32 : i32, i32
  }
}

</mosaic_0001>

<llo_original>
// kernel: tpu_custom_call.1
$region0: #{tpu_custom_call.1}
  #allocation0 [shape = 'u32[]', space=smem, size = 0x4, offset = 0x4, fixed_abs, tag = 'smem constant byte address 0x4 - core index']
  #allocation1 [shape = 'u32[144,128]{1,0:T(1,128)}', space=vmem, size = 0x12000, scoped, tag = 'internal scratch']
  %s0 = inlined_call_operand.vmem [shape: f32[8,32], index: 0, kind: input, shape index: {}]
  %s1 = inlined_call_operand.vmem [shape: bf16[32,256], index: 1, kind: input, shape index: {}]
  %s2 = inlined_call_operand.vmem [shape: f32[1,256], index: 2, kind: input, shape index: {}]
  %s3 = inlined_call_operand.hbm [shape: bf16[256,256], index: 3, kind: input, shape index: {}]
  %s4 = inlined_call_operand.vmem [shape: f32[1,256], index: 4, kind: input, shape index: {}]
  %s5 = inlined_call_operand.vmem [shape: bf16[256,10], index: 5, kind: input, shape index: {}]
  %s6 = inlined_call_operand.vmem [shape: f32[1,10], index: 6, kind: input, shape index: {}]
  %s7 = inlined_call_operand.vmem [shape: f32[2], index: 7, kind: input, shape index: {}]
  %s8 = inlined_call_operand.hbm [shape: f32[8,10], index: 8, kind: output, shape index: {}]
  %s9 = sld [smem:[#allocation0]]
  $region50: #{tpu_custom_call.1} parent=0
    _
  %s11 = ssub.s32 1, %s9
  %s12 = scalar_select 0, %s11, %s9
  $region1: #{tpu_custom_call.1} parent=0
    #allocation2 [shape = 'u8[131072]{0}', space=vmem, size = 0x20000, scoped, tag = 'input window, operand 3, single buffered']
    #allocation3 [shape = 's32[1]{0}', space=sflag, size = 0x4, scoped, tag = 'scoped memory for tpu_custom_call.1']
    #allocation4 [shape = 's32[1]{0}', space=sflag, size = 0x4, scoped, tag = 'scoped memory for tpu_custom_call.1']
    #allocation5 [shape = 's32[1]{0}', space=sflag, size = 0x4, scoped, tag = 'scoped memory for tpu_custom_call.1']
    #allocation6 [shape = 'u8[512]{0}', space=smem, size = 0x200, scoped, tag = 'input window, operand 7, single buffered']
    #allocation7 [shape = 'u8[4096]{0}', space=vmem, size = 0x1000, scoped, tag = 'output window, operand 0, single buffered']
    %13 = vsyncpa [#allocation3], 0
    %14 = vsyncpa [#allocation5], 0
    %15 = vsyncpa [#allocation4], 0
    // Predicated region
    $region2: #{tpu_custom_call.1} parent=1 // pred_check
      _
    $region3: #{tpu_custom_call.1} parent=1 // pred_check_branch
      %17 = sbr.rel (0) target = $region5
    $region4: #{tpu_custom_call.1} parent=1 // pred_region
      _
    $region5: #{tpu_custom_call.1} parent=1 // pred_fallthru
      _
    // Predicated region
    $region6: #{tpu_custom_call.1} parent=1 // pred_check
      _
    $region7: #{tpu_custom_call.1} parent=1 // pred_check_branch
      %19 = sbr.rel (0) target = $region9
    $region8: #{tpu_custom_call.1} parent=1 // pred_region
      _
    $region9: #{tpu_custom_call.1} parent=1 // pred_fallthru
      _
    // Predicated region
    $region10: #{tpu_custom_call.1} parent=1 // pred_check
      _
    $region11: #{tpu_custom_call.1} parent=1 // pred_check_branch
      %21 = sbr.rel (0) target = $region13
    $region12: #{tpu_custom_call.1} parent=1 // pred_region
      _
    $region13: #{tpu_custom_call.1} parent=1 // pred_fallthru
      _
    // Predicated region
    $region14: #{tpu_custom_call.1} parent=1 // pred_check
      _
    $region15: #{tpu_custom_call.1} parent=1 // pred_check_branch
      %23 = sbr.rel (0) target = $region17
    $region16: #{tpu_custom_call.1} parent=1 // pred_region
      %s25 = ssub.s32 4096, 4096
      %26 = vsyncadd [#allocation3], %s25
      %s27 = sshll.u32 [#allocation2], 4
      %s28 = int_to_ptr.vmem [resolvable:$true] %s27
      %33 = dma.hbm_to_vmem [thread:$0]  %s3, 4096, %s28, [#allocation3], 128, 128, 8
    $region17: #{tpu_custom_call.1} parent=1 // pred_fallthru
      _
    // Predicated region
    $region18: #{tpu_custom_call.1} parent=1 // pred_check
      _
    $region19: #{tpu_custom_call.1} parent=1 // pred_check_branch
      %35 = sbr.rel (0) target = $region21
    $region20: #{tpu_custom_call.1} parent=1 // pred_region
      _
    $region21: #{tpu_custom_call.1} parent=1 // pred_fallthru
      _
    // Predicated region
    $region22: #{tpu_custom_call.1} parent=1 // pred_check
      _
    $region23: #{tpu_custom_call.1} parent=1 // pred_check_branch
      %37 = sbr.rel (0) target = $region25
    $region24: #{tpu_custom_call.1} parent=1 // pred_region
      _
    $region25: #{tpu_custom_call.1} parent=1 // pred_fallthru
      _
    // Predicated region
    $region26: #{tpu_custom_call.1} parent=1 // pred_check
      _
    $region27: #{tpu_custom_call.1} parent=1 // pred_check_branch
      %39 = sbr.rel (0) target = $region29
    $region28: #{tpu_custom_call.1} parent=1 // pred_region
      _
    $region29: #{tpu_custom_call.1} parent=1 // pred_fallthru
      _
    // Predicated region
    $region30: #{tpu_custom_call.1} parent=1 // pred_check
      _
    $region31: #{tpu_custom_call.1} parent=1 // pred_check_branch
      %41 = sbr.rel (0) target = $region33
    $region32: #{tpu_custom_call.1} parent=1 // pred_region
      %s43 = ssub.s32 16, 16
      %44 = vsyncadd [#allocation5], %s43
      %s46 = sshll.u32 %s7, 4
      %s47 = int_to_ptr.vmem [resolvable:$true] %s46
      %49 = dma.vmem_to_smem %s47, 16, [#allocation6], [#allocation5]
    $region33: #{tpu_custom_call.1} parent=1 // pred_fallthru
      _
    // Predicated region
    $region34: #{tpu_custom_call.1} parent=1 // pred_check
      _
    $region35: #{tpu_custom_call.1} parent=1 // pred_check_branch
      %51 = sbr.rel (0) target = $region37
    $region36: #{tpu_custom_call.1} parent=1 // pred_region
      %52 = dma.done [#allocation3], 4096
    $region37: #{tpu_custom_call.1} parent=1 // pred_fallthru
      _
    // Predicated region
    $region38: #{tpu_custom_call.1} parent=1 // pred_check
      _
    $region39: #{tpu_custom_call.1} parent=1 // pred_check_branch
      %54 = sbr.rel (0) target = $region41
    $region40: #{tpu_custom_call.1} parent=1 // pred_region
      %55 = dma.done [#allocation5], 16
    $region41: #{tpu_custom_call.1} parent=1 // pred_fallthru
      _
    %56 = sfence
    %s58 = sld [smem:[#allocation6]]
    %s59 = sld [smem:[#allocation6 + $0x1]]
    %v60 = vld [vmem:[%s0] sm:$0xff]
    %v61 = vpack.c.bf16 %v60, %v60
    %v62 = vld [vmem:[%s1] sm:$0xff]
    %v63 = vld [vmem:[%s1 + $0x8] sm:$0xff]
    %v64 = vld [vmem:[%s1 + $0x10] sm:$0xff]
    %v65 = vld [vmem:[%s1 + $0x18] sm:$0xff]
    %v66 = vld [vmem:[%s2] sm:$0x3]
    %v68 = vlaneseq
    %v69 = vshrl.u32 %v68, 7
    %v70 = vsub.s32 0, %v69
    %v71 = vrot.slane %v66, %v70
    %v72 = vlaneseq
    %v73 = vshrl.u32 %v72, 7
    %v74 = vsub.s32 1, %v73
    %v75 = vrot.slane %v66, %v74
    %v82 = vunpack.c.l.b16 %v62
    %v83 = vunpack.c.h.b16 %v62
    %v84 = vunpack.c.l.b16 %v63
    %v85 = vunpack.c.h.b16 %v63
    %v86 = vunpack.c.l.b16 %v64
    %v87 = vunpack.c.h.b16 %v64
    %v88 = vunpack.c.l.b16 %v65
    %v89 = vunpack.c.h.b16 %v65
    %v90 = vpack.c.b16 %v84, %v82
    %v91 = vpack.c.b16 %v85, %v83
    %v92 = vpack.c.b16 %v88, %v86
    %v93 = vpack.c.b16 %v89, %v87
    %vm98 = vcmask 261120
    %v100 = vsel %vm98, %v61, 0
    %102 = vmatprep.subr.bf16.mxu0 %v91
    %103 = vmatpush1.bf16.msra.mxu0 %v90
    %104 = vmatprep.subr.bf16.mxu0 %v93
    %105 = vmatpush1.bf16.msra.mxu0 %v92
    %106 = vmatprep.subr.bf16.mxu0 0
    %107 = vmatpush1.bf16.msra.mxu0 0
    %108 = vmatprep.subr.bf16.mxu0 0
    %109 = vmatpush1.bf16.msra.mxu0 0
    %110 = vmatprep.subr.bf16.mxu0 0
    %111 = vmatpush1.bf16.msra.mxu0 0
    %112 = vmatprep.subr.bf16.mxu0 0
    %113 = vmatpush1.bf16.msra.mxu0 0
    %114 = vmatprep.subr.bf16.mxu0 0
    %115 = vmatpush1.bf16.msra.mxu0 0
    %116 = vmatprep.subr.bf16.mxu0 0
    %117 = vmatpush1.bf16.msra.mxu0 0
    %118 = vmatprep.subr.bf16.mxu0 0
    %119 = vmatpush1.bf16.msra.mxu0 0
    %120 = vmatprep.subr.bf16.mxu0 0
    %121 = vmatpush1.bf16.msra.mxu0 0
    %122 = vmatprep.subr.bf16.mxu0 0
    %123 = vmatpush1.bf16.msra.mxu0 0
    %124 = vmatprep.subr.bf16.mxu0 0
    %125 = vmatpush1.bf16.msra.mxu0 0
    %126 = vmatprep.subr.bf16.mxu0 0
    %127 = vmatpush1.bf16.msra.mxu0 0
    %128 = vmatprep.subr.bf16.mxu0 0
    %129 = vmatpush1.bf16.msra.mxu0 0
    %130 = vmatprep.subr.bf16.mxu0 0
    %131 = vmatpush1.bf16.msra.mxu0 0
    %132 = vmatprep.subr.bf16.mxu0 0
    %133 = vmatpush1.bf16.msra.mxu0 0
    %134 = vmatprep.mubr.bf16.mxu0 0
    %135 = vmatmul.mubr.bf16.gmra.mrb[0].mxu0 %v100
    %v136 = vpop.f32.mrb[0].mxu0
    %v137 = vadd.f32 %v71, %v136
    %v138 = vpop.f32.mrb[0].mxu0
    %v139 = vadd.f32 %v75, %v138
    %v140 = vpop.f32.mrb[0].mxu0
    %v141 = vpop.f32.mrb[0].mxu0
    %142 = vdwg.mxu0
    %vm143 = vcmp.ge.f32.partialorder %v137, 0.0
    %vm144 = vcmp.ge.f32.partialorder %v139, 0.0
    %v145 = vstv %s58
    %v146 = vmul.f32 %v145, %v137
    %v147 = vmul.f32 %v145, %v139
    %v148 = vsel %vm143, %v137, %v146
    %v149 = vsel %vm144, %v139, %v147
    %v150 = vpack.c.bf16 %v148, %v148
    %v151 = vpack.c.bf16 %v149, %v149
    %v152 = vld [vmem:[#allocation2] sm:$0xff]
    %v153 = vld [vmem:[#allocation2 + $0x8] sm:$0xff]
    %v154 = vld [vmem:[#allocation2 + $0x10] sm:$0xff]
    %v155 = vld [vmem:[#allocation2 + $0x18] sm:$0xff]
    %v156 = vld [vmem:[#allocation2 + $0x20] sm:$0xff]
    %v157 = vld [vmem:[#allocation2 + $0x28] sm:$0xff]
    %v158 = vld [vmem:[#allocation2 + $0x30] sm:$0xff]
    %v159 = vld [vmem:[#allocation2 + $0x38] sm:$0xff]
    %v160 = vld [vmem:[#allocation2 + $0x40] sm:$0xff]
    %v161 = vld [vmem:[#allocation2 + $0x48] sm:$0xff]
    %v162 = vld [vmem:[#allocation2 + $0x50] sm:$0xff]
    %v163 = vld [vmem:[#allocation2 + $0x58] sm:$0xff]
    %v164 = vld [vmem:[#allocation2 + $0x60] sm:$0xff]
    %v165 = vld [vmem:[#allocation2 + $0x68] sm:$0xff]
    %v166 = vld [vmem:[#allocation2 + $0x70] sm:$0xff]
    %v167 = vld [vmem:[#allocation2 + $0x78] sm:$0xff]
    %v168 = vld [vmem:[#allocation2 + $0x80] sm:$0xff]
    %v169 = vld [vmem:[#allocation2 + $0x88] sm:$0xff]
    %v170 = vld [vmem:[#allocation2 + $0x90] sm:$0xff]
    %v171 = vld [vmem:[#allocation2 + $0x98] sm:$0xff]
    %v172 = vld [vmem:[#allocation2 + $0xa0] sm:$0xff]
    %v173 = vld [vmem:[#allocation2 + $0xa8] sm:$0xff]
    %v174 = vld [vmem:[#allocation2 + $0xb0] sm:$0xff]
    %v175 = vld [vmem:[#allocation2 + $0xb8] sm:$0xff]
    %v176 = vld [vmem:[#allocation2 + $0xc0] sm:$0xff]
    %v177 = vld [vmem:[#allocation2 + $0xc8] sm:$0xff]
    %v178 = vld [vmem:[#allocation2 + $0xd0] sm:$0xff]
    %v179 = vld [vmem:[#allocation2 + $0xd8] sm:$0xff]
    %v180 = vld [vmem:[#allocation2 + $0xe0] sm:$0xff]
    %v181 = vld [vmem:[#allocation2 + $0xe8] sm:$0xff]
    %v182 = vld [vmem:[#allocation2 + $0xf0] sm:$0xff]
    %v183 = vld [vmem:[#allocation2 + $0xf8] sm:$0xff]
    %v184 = vld [vmem:[%s4] sm:$0x3]
    %v186 = vlaneseq
    %v187 = vshrl.u32 %v186, 7
    %v188 = vsub.s32 0, %v187
    %v189 = vrot.slane %v184, %v188
    %v190 = vlaneseq
    %v191 = vshrl.u32 %v190, 7
    %v192 = vsub.s32 1, %v191
    %v193 = vrot.slane %v184, %v192
    %v228 = vunpack.c.l.b16 %v152
    %v229 = vunpack.c.h.b16 %v152
    %v230 = vunpack.c.l.b16 %v153
    %v231 = vunpack.c.h.b16 %v153
    %v232 = vunpack.c.l.b16 %v154
    %v233 = vunpack.c.h.b16 %v154
    %v234 = vunpack.c.l.b16 %v155
    %v235 = vunpack.c.h.b16 %v155
    %v236 = vunpack.c.l.b16 %v156
    %v237 = vunpack.c.h.b16 %v156
    %v238 = vunpack.c.l.b16 %v157
    %v239 = vunpack.c.h.b16 %v157
    %v240 = vunpack.c.l.b16 %v158
    %v241 = vunpack.c.h.b16 %v158
    %v242 = vunpack.c.l.b16 %v159
    %v243 = vunpack.c.h.b16 %v159
    %v244 = vunpack.c.l.b16 %v160
    %v245 = vunpack.c.h.b16 %v160
    %v246 = vunpack.c.l.b16 %v161
    %v247 = vunpack.c.h.b16 %v161
    %v248 = vunpack.c.l.b16 %v162
    %v249 = vunpack.c.h.b16 %v162
    %v250 = vunpack.c.l.b16 %v163
    %v251 = vunpack.c.h.b16 %v163
    %v252 = vunpack.c.l.b16 %v164
    %v253 = vunpack.c.h.b16 %v164
    %v254 = vunpack.c.l.b16 %v165
    %v255 = vunpack.c.h.b16 %v165
    %v256 = vunpack.c.l.b16 %v166
    %v257 = vunpack.c.h.b16 %v166
    %v258 = vunpack.c.l.b16 %v167
    %v259 = vunpack.c.h.b16 %v167
    %v260 = vunpack.c.l.b16 %v168
    %v261 = vunpack.c.h.b16 %v168
    %v262 = vunpack.c.l.b16 %v169
    %v263 = vunpack.c.h.b16 %v169
    %v264 = vunpack.c.l.b16 %v170
    %v265 = vunpack.c.h.b16 %v170
    %v266 = vunpack.c.l.b16 %v171
    %v267 = vunpack.c.h.b16 %v171
    %v268 = vunpack.c.l.b16 %v172
    %v269 = vunpack.c.h.b16 %v172
    %v270 = vunpack.c.l.b16 %v173
    %v271 = vunpack.c.h.b16 %v173
    %v272 = vunpack.c.l.b16 %v174
    %v273 = vunpack.c.h.b16 %v174
    %v274 = vunpack.c.l.b16 %v175
    %v275 = vunpack.c.h.b16 %v175
    %v276 = vunpack.c.l.b16 %v176
    %v277 = vunpack.c.h.b16 %v176
    %v278 = vunpack.c.l.b16 %v177
    %v279 = vunpack.c.h.b16 %v177
    %v280 = vunpack.c.l.b16 %v178
    %v281 = vunpack.c.h.b16 %v178
    %v282 = vunpack.c.l.b16 %v179
    %v283 = vunpack.c.h.b16 %v179
    %v284 = vunpack.c.l.b16 %v180
    %v285 = vunpack.c.h.b16 %v180
    %v286 = vunpack.c.l.b16 %v181
    %v287 = vunpack.c.h.b16 %v181
    %v288 = vunpack.c.l.b16 %v182
    %v289 = vunpack.c.h.b16 %v182
    %v290 = vunpack.c.l.b16 %v183
    %v291 = vunpack.c.h.b16 %v183
    %v292 = vpack.c.b16 %v230, %v228
    %v293 = vpack.c.b16 %v231, %v229
    %v294 = vpack.c.b16 %v234, %v232
    %v295 = vpack.c.b16 %v235, %v233
    %v296 = vpack.c.b16 %v238, %v236
    %v297 = vpack.c.b16 %v239, %v237
    %v298 = vpack.c.b16 %v242, %v240
    %v299 = vpack.c.b16 %v243, %v241
    %v300 = vpack.c.b16 %v246, %v244
    %v301 = vpack.c.b16 %v247, %v245
    %v302 = vpack.c.b16 %v250, %v248
    %v303 = vpack.c.b16 %v251, %v249
    %v304 = vpack.c.b16 %v254, %v252
    %v305 = vpack.c.b16 %v255, %v253
    %v306 = vpack.c.b16 %v258, %v256
    %v307 = vpack.c.b16 %v259, %v257
    %v308 = vpack.c.b16 %v262, %v260
    %v309 = vpack.c.b16 %v263, %v261
    %v310 = vpack.c.b16 %v266, %v264
    %v311 = vpack.c.b16 %v267, %v265
    %v312 = vpack.c.b16 %v270, %v268
    %v313 = vpack.c.b16 %v271, %v269
    %v314 = vpack.c.b16 %v274, %v272
    %v315 = vpack.c.b16 %v275, %v273
    %v316 = vpack.c.b16 %v278, %v276
    %v317 = vpack.c.b16 %v279, %v277
    %v318 = vpack.c.b16 %v282, %v280
    %v319 = vpack.c.b16 %v283, %v281
    %v320 = vpack.c.b16 %v286, %v284
    %v321 = vpack.c.b16 %v287, %v285
    %v322 = vpack.c.b16 %v290, %v288
    %v323 = vpack.c.b16 %v291, %v289
    %356 = vmatprep.subr.bf16.mxu0 %v293
    %357 = vmatpush1.bf16.msra.mxu0 %v292
    %358 = vmatprep.subr.bf16.mxu0 %v295
    %359 = vmatpush1.bf16.msra.mxu0 %v294
    %360 = vmatprep.subr.bf16.mxu0 %v297
    %361 = vmatpush1.bf16.msra.mxu0 %v296
    %362 = vmatprep.subr.bf16.mxu0 %v299
    %363 = vmatpush1.bf16.msra.mxu0 %v298
    %364 = vmatprep.subr.bf16.mxu0 %v301
    %365 = vmatpush1.bf16.msra.mxu0 %v300
    %366 = vmatprep.subr.bf16.mxu0 %v303
    %367 = vmatpush1.bf16.msra.mxu0 %v302
    %368 = vmatprep.subr.bf16.mxu0 %v305
    %369 = vmatpush1.bf16.msra.mxu0 %v304
    %370 = vmatprep.subr.bf16.mxu0 %v307
    %371 = vmatpush1.bf16.msra.mxu0 %v306
    %372 = vmatprep.subr.bf16.mxu0 %v309
    %373 = vmatpush1.bf16.msra.mxu0 %v308
    %374 = vmatprep.subr.bf16.mxu0 %v311
    %375 = vmatpush1.bf16.msra.mxu0 %v310
    %376 = vmatprep.subr.bf16.mxu0 %v313
    %377 = vmatpush1.bf16.msra.mxu0 %v312
    %378 = vmatprep.subr.bf16.mxu0 %v315
    %379 = vmatpush1.bf16.msra.mxu0 %v314
    %380 = vmatprep.subr.bf16.mxu0 %v317
    %381 = vmatpush1.bf16.msra.mxu0 %v316
    %382 = vmatprep.subr.bf16.mxu0 %v319
    %383 = vmatpush1.bf16.msra.mxu0 %v318
    %384 = vmatprep.subr.bf16.mxu0 %v321
    %385 = vmatpush1.bf16.msra.mxu0 %v320
    %386 = vmatprep.subr.bf16.mxu0 %v323
    %387 = vmatpush1.bf16.msra.mxu0 %v322
    %388 = vmatprep.mubr.bf16.mxu0 %v151
    %389 = vmatmul.mubr.bf16.gmra.mrb[0].mxu0 %v150
    %v390 = vpop.f32.mrb[0].mxu0
    %v391 = vadd.f32 %v189, %v390
    %v392 = vpop.f32.mrb[0].mxu0
    %v393 = vadd.f32 %v193, %v392
    %v394 = vpop.f32.mrb[0].mxu0
    %v395 = vpop.f32.mrb[0].mxu0
    %396 = vdwg.mxu0
    %vm397 = vcmp.ge.f32.partialorder %v391, 0.0
    %vm398 = vcmp.ge.f32.partialorder %v393, 0.0
    %v399 = vstv %s59
    %v400 = vmul.f32 %v399, %v391
    %v401 = vmul.f32 %v399, %v393
    %v402 = vsel %vm397, %v391, %v400
    %v403 = vsel %vm398, %v393, %v401
    %v404 = vpack.c.bf16 %v402, %v402
    %v405 = vpack.c.bf16 %v403, %v403
    %v406 = vld [vmem:[%s5] sm:$0xf]
    %v407 = vld [vmem:[%s5 + $0x4] sm:$0xf]
    %v408 = vld [vmem:[%s5 + $0x8] sm:$0xf]
    %v409 = vld [vmem:[%s5 + $0xc] sm:$0xf]
    %v410 = vld [vmem:[%s5 + $0x10] sm:$0xf]
    %v411 = vld [vmem:[%s5 + $0x14] sm:$0xf]
    %v412 = vld [vmem:[%s5 + $0x18] sm:$0xf]
    %v413 = vld [vmem:[%s5 + $0x1c] sm:$0xf]
    %v414 = vld [vmem:[%s5 + $0x20] sm:$0xf]
    %v415 = vld [vmem:[%s5 + $0x24] sm:$0xf]
    %v416 = vld [vmem:[%s5 + $0x28] sm:$0xf]
    %v417 = vld [vmem:[%s5 + $0x2c] sm:$0xf]
    %v418 = vld [vmem:[%s5 + $0x30] sm:$0xf]
    %v419 = vld [vmem:[%s5 + $0x34] sm:$0xf]
    %v420 = vld [vmem:[%s5 + $0x38] sm:$0xf]
    %v421 = vld [vmem:[%s5 + $0x3c] sm:$0xf]
    %v422 = vld [vmem:[%s5 + $0x40] sm:$0xf]
    %v423 = vld [vmem:[%s5 + $0x44] sm:$0xf]
    %v424 = vld [vmem:[%s5 + $0x48] sm:$0xf]
    %v425 = vld [vmem:[%s5 + $0x4c] sm:$0xf]
    %v426 = vld [vmem:[%s5 + $0x50] sm:$0xf]
    %v427 = vld [vmem:[%s5 + $0x54] sm:$0xf]
    %v428 = vld [vmem:[%s5 + $0x58] sm:$0xf]
    %v429 = vld [vmem:[%s5 + $0x5c] sm:$0xf]
    %v430 = vld [vmem:[%s5 + $0x60] sm:$0xf]
    %v431 = vld [vmem:[%s5 + $0x64] sm:$0xf]
    %v432 = vld [vmem:[%s5 + $0x68] sm:$0xf]
    %v433 = vld [vmem:[%s5 + $0x6c] sm:$0xf]
    %v434 = vld [vmem:[%s5 + $0x70] sm:$0xf]
    %v435 = vld [vmem:[%s5 + $0x74] sm:$0xf]
    %v436 = vld [vmem:[%s5 + $0x78] sm:$0xf]
    %v437 = vld [vmem:[%s5 + $0x7c] sm:$0xf]
    %v438 = vld [vmem:[%s6] sm:$0x1]
    %v440 = vlaneseq
    %v441 = vshrl.u32 %v440, 7
    %v442 = vsub.s32 0, %v441
    %v443 = vrot.slane %v438, %v442
    %v477 = vunpack.c.l.b16 %v406
    %v478 = vunpack.c.l.b16 %v407
    %v479 = vunpack.c.l.b16 %v408
    %v480 = vunpack.c.l.b16 %v409
    %v481 = vunpack.c.l.b16 %v410
    %v482 = vunpack.c.l.b16 %v411
    %v483 = vunpack.c.l.b16 %v412
    %v484 = vunpack.c.l.b16 %v413
    %v485 = vunpack.c.l.b16 %v414
    %v486 = vunpack.c.l.b16 %v415
    %v487 = vunpack.c.l.b16 %v416
    %v488 = vunpack.c.l.b16 %v417
    %v489 = vunpack.c.l.b16 %v418
    %v490 = vunpack.c.l.b16 %v419
    %v491 = vunpack.c.l.b16 %v420
    %v492 = vunpack.c.l.b16 %v421
    %v493 = vunpack.c.l.b16 %v422
    %v494 = vunpack.c.l.b16 %v423
    %v495 = vunpack.c.l.b16 %v424
    %v496 = vunpack.c.l.b16 %v425
    %v497 = vunpack.c.l.b16 %v426
    %v498 = vunpack.c.l.b16 %v427
    %v499 = vunpack.c.l.b16 %v428
    %v500 = vunpack.c.l.b16 %v429
    %v501 = vunpack.c.l.b16 %v430
    %v502 = vunpack.c.l.b16 %v431
    %v503 = vunpack.c.l.b16 %v432
    %v504 = vunpack.c.l.b16 %v433
    %v505 = vunpack.c.l.b16 %v434
    %v506 = vunpack.c.l.b16 %v435
    %v507 = vunpack.c.l.b16 %v436
    %v508 = vunpack.c.l.b16 %v437
    %v509 = vpack.c.b16 %v478, %v477
    %v510 = vpack.c.b16 %v480, %v479
    %v511 = vpack.c.b16 %v482, %v481
    %v512 = vpack.c.b16 %v484, %v483
    %v513 = vpack.c.b16 %v486, %v485
    %v514 = vpack.c.b16 %v488, %v487
    %v515 = vpack.c.b16 %v490, %v489
    %v516 = vpack.c.b16 %v492, %v491
    %v517 = vpack.c.b16 %v494, %v493
    %v518 = vpack.c.b16 %v496, %v495
    %v519 = vpack.c.b16 %v498, %v497
    %v520 = vpack.c.b16 %v500, %v499
    %v521 = vpack.c.b16 %v502, %v501
    %v522 = vpack.c.b16 %v504, %v503
    %v523 = vpack.c.b16 %v506, %v505
    %v524 = vpack.c.b16 %v508, %v507
    %541 = vmatprep.subr.bf16.mxu0 0
    %542 = vmatpush1.bf16.msra.mxu0 %v509
    %543 = vmatprep.subr.bf16.mxu0 0
    %544 = vmatpush1.bf16.msra.mxu0 %v510
    %545 = vmatprep.subr.bf16.mxu0 0
    %546 = vmatpush1.bf16.msra.mxu0 %v511
    %547 = vmatprep.subr.bf16.mxu0 0
    %548 = vmatpush1.bf16.msra.mxu0 %v512
    %549 = vmatprep.subr.bf16.mxu0 0
    %550 = vmatpush1.bf16.msra.mxu0 %v513
    %551 = vmatprep.subr.bf16.mxu0 0
    %552 = vmatpush1.bf16.msra.mxu0 %v514
    %553 = vmatprep.subr.bf16.mxu0 0
    %554 = vmatpush1.bf16.msra.mxu0 %v515
    %555 = vmatprep.subr.bf16.mxu0 0
    %556 = vmatpush1.bf16.msra.mxu0 %v516
    %557 = vmatprep.subr.bf16.mxu0 0
    %558 = vmatpush1.bf16.msra.mxu0 %v517
    %559 = vmatprep.subr.bf16.mxu0 0
    %560 = vmatpush1.bf16.msra.mxu0 %v518
    %561 = vmatprep.subr.bf16.mxu0 0
    %562 = vmatpush1.bf16.msra.mxu0 %v519
    %563 = vmatprep.subr.bf16.mxu0 0
    %564 = vmatpush1.bf16.msra.mxu0 %v520
    %565 = vmatprep.subr.bf16.mxu0 0
    %566 = vmatpush1.bf16.msra.mxu0 %v521
    %567 = vmatprep.subr.bf16.mxu0 0
    %568 = vmatpush1.bf16.msra.mxu0 %v522
    %569 = vmatprep.subr.bf16.mxu0 0
    %570 = vmatpush1.bf16.msra.mxu0 %v523
    %571 = vmatprep.subr.bf16.mxu0 0
    %572 = vmatpush1.bf16.msra.mxu0 %v524
    %573 = vmatprep.mubr.bf16.mxu0 %v405
    %574 = vmatmul.mubr.bf16.gmra.mrb[0].mxu0 %v404
    %v575 = vpop.f32.mrb[0].mxu0
    %v576 = vadd.f32 %v443, %v575
    %v577 = vpop.f32.mrb[0].mxu0
    %v578 = vpop.f32.mrb[0].mxu0
    %v579 = vpop.f32.mrb[0].mxu0
    %580 = vdwg.mxu0
    %vm581 = vcmask 80896
    %582 = vst.msk [vmem:[#allocation7] sm:$0xff] %vm581, %v576
    // Predicated region
    $region42: #{tpu_custom_call.1} parent=1 // pred_check
      _
    $region43: #{tpu_custom_call.1} parent=1 // pred_check_branch
      %584 = sbr.rel (0) target = $region45
    $region44: #{tpu_custom_call.1} parent=1 // pred_region
      %s586 = ssub.s32 128, 128
      %587 = vsyncadd [#allocation4], %s586
      %s589 = sshll.u32 [#allocation7], 4
      %s590 = int_to_ptr.vmem [resolvable:$true] %s589
      %592 = dma.vmem_to_hbm [thread:$0]  %s590, 128, %s8, [#allocation4]
    $region45: #{tpu_custom_call.1} parent=1 // pred_fallthru
      _
    // Predicated region
    $region46: #{tpu_custom_call.1} parent=1 // pred_check
      _
    $region47: #{tpu_custom_call.1} parent=1 // pred_check_branch
      %594 = sbr.rel (0) target = $region49
    $region48: #{tpu_custom_call.1} parent=1 // pred_region
      %595 = dma.done [#allocation4], 128
    $region49: #{tpu_custom_call.1} parent=1 // pred_fallthru
      _
    %596 = vsyncpa [#allocation3], 1
    %597 = vsyncpa [#allocation4], 1
    %598 = vsyncpa [#allocation5], 1

</llo_original>
